<compile_context>
chip_gen: v6e
topology: v6e:2x2x1
jax: 0.10.0
libtpu: 0.0.40
codegen_flags: <defaults>
</compile_context>

<pallas_src>
import jax
import jax.numpy as jnp
from jax.experimental import pallas as pl
from jax.experimental.pallas import tpu as pltpu


_LANE = 128  # TPU lane width


# ---------------------------------------------------------------------------
# Kernel bodies
# ---------------------------------------------------------------------------

def _lg_kernel(x_ref, data_ref, mask_ref, out_ref):
    """out = data * x * mask.

    x: f32 scalar in SMEM.  mask is a (tm, 1) column that broadcasts over the
    hidden dim.  The big multiply runs in the data's native dtype (bf16 stays
    bf16 on v6e/v7x); only the tiny per-row scale is computed in f32.
    """
    x = x_ref[0]                                        # f32 scalar (SMEM)
    d = data_ref[...]                                   # (tm, H) native dtype
    scale = (mask_ref[...].astype(jnp.float32) * x).astype(d.dtype)   # (tm, 1)
    out_ref[...] = (d * scale).astype(out_ref.dtype)


def _time_head_kernel(x_ref, enc_ref, w_ref, mask_ref, out_ref):
    """Fused Predictor(d_model -> 1, no bias) + LG, lane-dense output.

    enc block is (g*128, D) rows; it is split into (g, 128, D) (leading-dim
    split only, minor dim untouched -> free relayout) so the per-row dot with
    the weight vector lands directly in a lane-dense (g, 128) result.
    """
    x = x_ref[0]                                        # f32 scalar (SMEM)
    g, lane = out_ref.shape                             # static block dims
    d = enc_ref.shape[-1]
    enc3 = enc_ref[...].reshape(g, lane, d)             # (g, 128, D)
    w3 = w_ref[...].reshape(1, 1, d)                    # (1, 1, D), resident
    # Linear(d_model -> 1, no bias): per-row dot, accumulated in f32.
    t = jnp.sum((enc3 * w3).astype(jnp.float32), axis=-1)   # (g, 128)
    # Reference applies the {0,1} mask both before and after the log-normal
    # scale; mask**2 == mask, so a single multiply is equivalent.
    m = mask_ref[...].astype(jnp.float32)                # (g, 128)
    out_ref[...] = (t * m * x).astype(out_ref.dtype)


# ---------------------------------------------------------------------------
# Generation-aware tiling helpers
# ---------------------------------------------------------------------------

def _round_down(x, q):
    return (x // q) * q


def _vmem_plan():
    """(vmem_limit_bytes, per-block byte target), derived from the chip."""
    cap = 128 * 1024 * 1024
    try:
        info = pltpu.get_tpu_info()
        for attr in ("vmem_capacity_bytes", "vmem_size_bytes", "vmem_bytes"):
            v = getattr(info, attr, None)
            if v:
                cap = int(v)
                break
    except Exception:
        pass
    # Never request more scoped VMEM than ~3/4 of physical; cap at 64 MiB.
    vmem_limit = min(64 * 1024 * 1024, (cap * 3) // 4)
    if cap <= 64 * 1024 * 1024:
        # v7x-class: small VMEM but ~3.2 TB/s HBM -> bigger blocks re-amortize
        # the fixed ~0.35 us per-step overhead.
        target_bytes = 6 * 1024 * 1024
    else:
        # v5e / v6e: >=2 MiB-class blocks already reach ~86% of HBM roofline.
        target_bytes = 4 * 1024 * 1024
    return vmem_limit, target_bytes


def _pick_block_rows(n_rows, lane_elems, itemsize, vmem_limit, target_bytes):
    """Rows per block for the (rows, H) elementwise LG kernel."""
    sub = {4: 8, 2: 16, 1: 32}.get(itemsize, 8)
    per_row_data = lane_elems * itemsize
    # data-in + data-out + lane-padded (rows, 1) mask block; double buffered,
    # keep total <= ~2/3 of the scoped VMEM limit.
    per_row_total = 2 * per_row_data + _LANE * itemsize
    rows = max(sub, target_bytes // per_row_data)
    rows_vmem = max(sub, (vmem_limit // 3) // per_row_total)
    rows = min(rows, rows_vmem)
    # Keep >= 2 grid steps when possible so both TensorCores get work on v7x.
    if n_rows >= 2 * sub:
        rows = min(rows, max(sub, _round_down(pl.cdiv(n_rows, 2), sub)))
    if rows >= n_rows:
        return n_rows                      # single full-extent block is legal
    return max(sub, _round_down(rows, sub))


def _pick_block_groups(n_groups, d, itemsize, vmem_limit, target_bytes):
    """128-row groups per block for the fused time head."""
    per_group_in = _LANE * d * itemsize                     # enc rows
    per_group_total = per_group_in + 2 * _LANE * itemsize   # + mask + out (dense)
    g = max(1, target_bytes // per_group_in)
    g_vmem = max(1, (vmem_limit // 3) // per_group_total)
    g = min(g, g_vmem)
    if n_groups >= 2:
        g = min(g, pl.cdiv(n_groups, 2))   # keep >= 2 grid steps for megacore
    if g >= n_groups:
        return n_groups                    # full extent -> no divisibility rule
    # mask/out blocks are (g, 128): second-to-last dim must be a multiple of 8
    # (unless it is the full extent, handled above).
    g = _round_down(g, 8)
    if g == 0:
        g = min(8, n_groups)
    return g


# ---------------------------------------------------------------------------
# Wrappers
# ---------------------------------------------------------------------------

def lg_forward(data, non_pad_mask, key, *, block_rows=None, donate_data=False):
    """LG.forward: out = data * LogNormal(0,1).sample() * non_pad_mask."""
    B, S, H = data.shape
    assert non_pad_mask.shape == (B, S, 1)
    R = B * S

    data2 = data.reshape(R, H)
    mask2 = non_pad_mask.reshape(R, 1).astype(data.dtype)

    # LogNormal(0, 1).sample() = exp(N(0, 1)); f32 scalar lives in SMEM.
    x = jnp.exp(jax.random.normal(key, (), dtype=jnp.float32)).reshape((1,))

    itemsize = jnp.dtype(data.dtype).itemsize
    vmem_limit, target_bytes = _vmem_plan()
    tm = block_rows or _pick_block_rows(R, H, itemsize, vmem_limit, target_bytes)
    tm = min(tm, R)
    grid = (pl.cdiv(R, tm),)

    out2 = pl.pallas_call(
        _lg_kernel,
        out_shape=jax.ShapeDtypeStruct((R, H), data.dtype),
        grid=grid,
        in_specs=[
            pl.BlockSpec(memory_space=pltpu.MemorySpace.SMEM),   # x scalar
            pl.BlockSpec((tm, H), lambda i: (i, 0)),             # data rows
            pl.BlockSpec((tm, 1), lambda i: (i, 0)),             # mask column
        ],
        out_specs=pl.BlockSpec((tm, H), lambda i: (i, 0)),
        compiler_params=pltpu.CompilerParams(
            dimension_semantics=("parallel",),
            vmem_limit_bytes=vmem_limit,
        ),
        # Inputs are (x, data2, mask2): data2 is input index 1 (the SMEM scalar
        # counts as input 0), so {1: 0} reuses data's HBM buffer for the output
        # when the caller donates it.
        input_output_aliases={1: 0} if donate_data else {},
    )(x, data2, mask2)

    return out2.reshape(B, S, H)


def time_head_forward(enc_output, w_time, non_pad_mask, key, *, block_groups=None):
    """Fused Transformer time path: time_predictor(enc) followed by time_log (LG)."""
    B, S, D = enc_output.shape
    assert w_time.shape == (1, D)          # PyTorch Linear weight layout
    assert non_pad_mask.shape == (B, S, 1)
    R = B * S
    n_groups = pl.cdiv(R, _LANE)
    Rp = n_groups * _LANE

    enc2 = enc_output.reshape(R, D)
    if R < _LANE:
        # Tiny input: pad to one full 128-row group (negligible cost) so the
        # single enc block never exceeds the array.  For R >= 128 only the
        # standard ragged last block occurs and enc is never copied.
        enc2 = jnp.pad(enc2, ((0, _LANE - R), (0, 0)))

    mask_flat = non_pad_mask.reshape(R).astype(enc_output.dtype)
    if Rp != R:
        mask_flat = jnp.pad(mask_flat, (0, Rp - R))          # tiny (< 128 elems)
    mask3 = mask_flat.reshape(n_groups, _LANE)               # lane-dense mask

    x = jnp.exp(jax.random.normal(key, (), dtype=jnp.float32)).reshape((1,))

    itemsize = jnp.dtype(enc_output.dtype).itemsize
    vmem_limit, target_bytes = _vmem_plan()
    g = block_groups or _pick_block_groups(n_groups, D, itemsize,
                                           vmem_limit, target_bytes)
    g = min(g, n_groups)
    tm = g * _LANE
    grid = (pl.cdiv(n_groups, g),)

    out3 = pl.pallas_call(
        _time_head_kernel,
        out_shape=jax.ShapeDtypeStruct((n_groups, _LANE), enc_output.dtype),
        grid=grid,
        in_specs=[
            pl.BlockSpec(memory_space=pltpu.MemorySpace.SMEM),       # x scalar
            pl.BlockSpec((tm, D), lambda i: (i, 0)),                 # enc rows
            pl.BlockSpec((1, D), lambda i: (0, 0)),                  # weight (resident)
            pl.BlockSpec((g, _LANE), lambda i: (i, 0)),              # mask, lane-dense
        ],
        out_specs=pl.BlockSpec((g, _LANE), lambda i: (i, 0)),        # lane-dense out
        compiler_params=pltpu.CompilerParams(
            dimension_semantics=("parallel",),
            vmem_limit_bytes=vmem_limit,
        ),
    )(x, enc2, w_time, mask3)

    return out3.reshape(Rp)[:R].reshape(B, S, 1)


# ---------------------------------------------------------------------------
# Demo / self-check
# ---------------------------------------------------------------------------

if __name__ == "__main__":
    root = jax.random.PRNGKey(0)
    k_data, k_mask, k_sample, k_enc, k_w, k_mask2 = jax.random.split(root, 6)

    # Shared deterministic log-normal sample for reference checks.
    x_val = jnp.exp(jax.random.normal(k_sample, (), dtype=jnp.float32))

    # --- LG kernel ---------------------------------------------------------
    B, S, H = 2, 8, 128
    data = jax.random.normal(k_data, (B, S, H), dtype=jnp.float32)
    non_pad_mask = (jax.random.uniform(k_mask, (B, S, 1)) > 0.25).astype(jnp.float32)

    out = jax.block_until_ready(lg_forward(data, non_pad_mask, k_sample))
    ref = data * x_val * non_pad_mask
    assert out.shape == (B, S, H)
    assert jnp.allclose(out, ref, atol=1e-5, rtol=1e-5), "LG mismatch vs reference"

    # bf16 path (native bf16 compute inside the kernel on v6e/v7x).
    data_bf = data.astype(jnp.bfloat16)
    out_bf = jax.block_until_ready(lg_forward(data_bf, non_pad_mask, k_sample))
    ref_bf = data_bf.astype(jnp.float32) * x_val * non_pad_mask
    assert jnp.allclose(out_bf.astype(jnp.float32), ref_bf, atol=3e-2, rtol=3e-2), \
        "LG bf16 mismatch vs reference"

    # --- fused time head: Predictor(d_model, 1) + LG ------------------------
    Bt, St, D = 2, 64, 128                  # R = 128 -> lane-dense groups, no pad
    enc = jax.random.normal(k_enc, (Bt, St, D), dtype=jnp.float32)
    w_time = jax.random.normal(k_w, (1, D), dtype=jnp.float32) / jnp.sqrt(D)
    npm = (jax.random.uniform(k_mask2, (Bt, St, 1)) > 0.25).astype(jnp.float32)

    tp = jax.block_until_ready(time_head_forward(enc, w_time, npm, k_sample))
    t_ref = (enc @ w_time.T) * npm          # Predictor (no bias) + mask
    t_ref = t_ref * x_val * npm             # LG
    assert tp.shape == (Bt, St, 1)
    assert jnp.allclose(tp, t_ref, atol=1e-4, rtol=1e-4), "time head mismatch"

    # Ragged case: R (= B*S) not a multiple of 128 exercises the padded-group path.
    enc_s, npm_s = enc[:, :8], npm[:, :8]
    tp2 = jax.block_until_ready(time_head_forward(enc_s, w_time, npm_s, k_sample))
    t_ref2 = (enc_s @ w_time.T) * npm_s * x_val * npm_s
    assert tp2.shape == (Bt, 8, 1)
    assert jnp.allclose(tp2, t_ref2, atol=1e-4, rtol=1e-4), "ragged time head mismatch"

    print("KERNEL_OK")
</pallas_src>

<mosaic_0001>
module attributes {stable_mosaic.version = 11 : i64} {
  func.func @_lg_kernel(%arg0: i32, %arg1: memref<1xf32, #tpu.memory_space<smem>>, %arg2: memref<8x128xf32, #tpu.memory_space<vmem>>, %arg3: memref<8x1xf32, #tpu.memory_space<vmem>>, %arg4: memref<8x128xf32, #tpu.memory_space<vmem>>) attributes {dimension_semantics = [#tpu.dimension_semantics<parallel>], iteration_bounds = array<i64: 2>, scalar_prefetch = 0 : i64, scratch_operands = 0 : i64, tpu.core_type = #tpu.core_type<tc>, window_params = [{transform_indices = @transform_0, window_bounds = array<i64: 1>}, {transform_indices = @transform_1, window_bounds = array<i64: 8, 128>}, {transform_indices = @transform_2, window_bounds = array<i64: 8, 1>}, {transform_indices = @transform_3, window_bounds = array<i64: 8, 128>}]} {
    %c0 = arith.constant 0 : index
    %0 = memref.load %arg1[%c0] : memref<1xf32, #tpu.memory_space<smem>>
    %c0_0 = arith.constant 0 : index
    %c0_1 = arith.constant 0 : index
    %1 = vector.load %arg2[%c0_0, %c0_1] : memref<8x128xf32, #tpu.memory_space<vmem>>, vector<8x128xf32>
    %c0_2 = arith.constant 0 : index
    %c0_3 = arith.constant 0 : index
    %2 = vector.load %arg3[%c0_2, %c0_3] : memref<8x1xf32, #tpu.memory_space<vmem>>, vector<8x1xf32>
    %3 = vector.broadcast %0 : f32 to vector<8x1xf32>
    %4 = arith.mulf %2, %3 : vector<8x1xf32>
    %5 = vector.broadcast %4 : vector<8x1xf32> to vector<8x128xf32>
    %6 = arith.mulf %1, %5 : vector<8x128xf32>
    %c0_4 = arith.constant 0 : index
    %c0_5 = arith.constant 0 : index
    %7 = vector.load %arg4[%c0_4, %c0_5] : memref<8x128xf32, #tpu.memory_space<vmem>>, vector<8x128xf32>
    tpu.vector_store %arg4[%c0_4, %c0_5], %6 {strides = array<i32>} : memref<8x128xf32, #tpu.memory_space<vmem>>, vector<8x128xf32>,
    return
  }
  func.func @transform_0(%arg0: i32) -> i32 {
    %c0_i32 = arith.constant 0 : i32
    %c0_i32_0 = arith.constant 0 : i32
    return %c0_i32 : i32
  }
  func.func @transform_1(%arg0: i32) -> (i32, i32) {
    %c0_i32 = arith.constant 0 : i32
    %c0_i32_0 = arith.constant 0 : i32
    return %arg0, %c0_i32 : i32, i32
  }
  func.func @transform_2(%arg0: i32) -> (i32, i32) {
    %c0_i32 = arith.constant 0 : i32
    %c0_i32_0 = arith.constant 0 : i32
    return %arg0, %c0_i32 : i32, i32
  }
  func.func @transform_3(%arg0: i32) -> (i32, i32) {
    %c0_i32 = arith.constant 0 : i32
    %c0_i32_0 = arith.constant 0 : i32
    return %arg0, %c0_i32 : i32, i32
  }
}

</mosaic_0001>

<llo_original>
// kernel: tpu_custom_call.1
$region0: #{tpu_custom_call.1}
  #allocation0 [shape = 'u32[]', space=smem, size = 0x4, offset = 0x4, fixed_abs, tag = 'smem constant byte address 0x4 - core index']
  #allocation1 [shape = 'u32[144,128]{1,0:T(1,128)}', space=vmem, size = 0x12000, scoped, tag = 'internal scratch']
  #allocation2 [shape = 'f32[1]{0:T(128)S(6)}', space=smem, size = 0x200, scoped, tag = 'scoped memory for tpu_custom_call.1']
  %s0 = inlined_call_operand.<no memory space> [shape: f32[1], index: 0, kind: input, shape index: {}]
  %s1 = inlined_call_operand.vmem [shape: f32[16,128], index: 1, kind: input, shape index: {}]
  %s2 = inlined_call_operand.vmem [shape: f32[16,1], index: 2, kind: input, shape index: {}]
  %s3 = inlined_call_operand.hbm [shape: f32[16,128], index: 3, kind: output, shape index: {}]
  %s4 = sld [smem:[#allocation0]]
  $region45: #{tpu_custom_call.1} parent=0
    _
  %s6 = ssub.s32 1, %s4
  %s7 = scalar_select 0, %s6, %s4
  %8 = sst [smem:[#allocation2]] %s0
  $region1: #{tpu_custom_call.1} parent=0
    #allocation3 [shape = 'u8[8192]{0}', space=vmem, size = 0x2000, scoped, tag = 'output window, operand 0']
    #allocation4 [shape = 's32[2]{0}', space=sflag, size = 0x8, scoped, tag = 'scoped memory for tpu_custom_call.1']
    %9 = vsyncpa [#allocation4], 0
    %s10 = scalar_lea.sflag [#allocation4], 1
    %11 = vsyncpa %s10, 0
    loop: start=0, step=1, limit=4
    $region2: #{tpu_custom_call.1} parent=1 // loop_pre_header
      _
    $region3: #{tpu_custom_call.1} parent=1 // loop_header
      %s13 = sphi 0, %s17
      %p14 = scmp.ge.s32.totalorder %s13, 4
      %s21 = sphi 0, %s21
      %s23 = sphi 0, %s21
      %s24 = sphi 0, %s23
      %s38 = sphi 0, %s24
      %s44 = sphi 0, %s46
      %s47 = sphi 0, %s44
      %s48 = sphi 0, %s47
      %s64 = sphi 0, %s48
      %s70 = sphi 0, %s72
      %s73 = sphi 0, %s70
      %s74 = sphi 0, %s73
      %s90 = sphi 0, %s74
      %s96 = sphi 0, %s98
      %s99 = sphi 0, %s96
      %s100 = sphi 0, %s99
      %s116 = sphi 0, %s100
    $region4: #{tpu_custom_call.1} parent=1 // loop_header_branch
      %16 = sbr.rel (%p14) target = $region8
    $region5: #{tpu_custom_call.1} parent=1 // loop_body
      %s18 = ssub.s32 %s13, 1
      %s19 = ssub.s32 %s13, 2
      %s20 = sadd.s32 %s13, 1
      %s22 = sadd.s32 %s21, 1
      %p25 = scmp.eq.s32.totalorder %s13, 1
      %p26 = scmp.ne.s32.totalorder %s21, %s23
      %p27 = scmp.eq.s32.totalorder %s13, 0
      %p28 = por %p26, %p27
      %p29 = scmp.ne.s32.totalorder %s21, %s23
      %p30 = scmp.eq.s32.totalorder %s18, 1
      %p31 = por %p29, %p30
      %p32 = scmp.ne.s32.totalorder %s23, %s24
      %p33 = scmp.eq.s32.totalorder %s18, 0
      %p34 = por %p32, %p33
      %p35 = scmp.ne.s32.totalorder %s23, %s24
      %p36 = scmp.eq.s32.totalorder %s19, 1
      %p37 = por %p35, %p36
      %p39 = scmp.ne.s32.totalorder %s24, %s38
      %p40 = scmp.eq.s32.totalorder %s19, 0
      %p41 = por %p39, %p40
      %s42 = ssub.s32 %s13, %s20
      %p43 = scmp.eq.s32.totalorder %s42, 0
      %s45 = sadd.s32 %s44, 1
      %s46 = scalar_select %p43, %s44, %s45
      %p49 = pneg %p43
      %p50 = scmp.eq.s32.totalorder %s13, 1
      %p51 = por %p49, %p50
      %p52 = scmp.ne.s32.totalorder %s44, %s47
      %p53 = scmp.eq.s32.totalorder %s13, 0
      %p54 = por %p52, %p53
      %p55 = scmp.ne.s32.totalorder %s44, %s47
      %p56 = scmp.eq.s32.totalorder %s18, 1
      %p57 = por %p55, %p56
      %p58 = scmp.ne.s32.totalorder %s47, %s48
      %p59 = scmp.eq.s32.totalorder %s18, 0
      %p60 = por %p58, %p59
      %p61 = scmp.ne.s32.totalorder %s47, %s48
      %p62 = scmp.eq.s32.totalorder %s19, 1
      %p63 = por %p61, %p62
      %p65 = scmp.ne.s32.totalorder %s48, %s64
      %p66 = scmp.eq.s32.totalorder %s19, 0
      %p67 = por %p65, %p66
      %s68 = ssub.s32 %s13, %s20
      %p69 = scmp.eq.s32.totalorder %s68, 0
      %s71 = sadd.s32 %s70, 1
      %s72 = scalar_select %p69, %s70, %s71
      %p75 = pneg %p69
      %p76 = scmp.eq.s32.totalorder %s13, 1
      %p77 = por %p75, %p76
      %p78 = scmp.ne.s32.totalorder %s70, %s73
      %p79 = scmp.eq.s32.totalorder %s13, 0
      %p80 = por %p78, %p79
      %p81 = scmp.ne.s32.totalorder %s70, %s73
      %p82 = scmp.eq.s32.totalorder %s18, 1
      %p83 = por %p81, %p82
      %p84 = scmp.ne.s32.totalorder %s73, %s74
      %p85 = scmp.eq.s32.totalorder %s18, 0
      %p86 = por %p84, %p85
      %p87 = scmp.ne.s32.totalorder %s73, %s74
      %p88 = scmp.eq.s32.totalorder %s19, 1
      %p89 = por %p87, %p88
      %p91 = scmp.ne.s32.totalorder %s74, %s90
      %p92 = scmp.eq.s32.totalorder %s19, 0
      %p93 = por %p91, %p92
      %s94 = ssub.s32 %s13, %s20
      %p95 = scmp.eq.s32.totalorder %s94, 0
      %s97 = sadd.s32 %s96, 1
      %s98 = scalar_select %p95, %s96, %s97
      %p101 = pneg %p95
      %p102 = scmp.eq.s32.totalorder %s13, 1
      %p103 = por %p101, %p102
      %p104 = scmp.ne.s32.totalorder %s96, %s99
      %p105 = scmp.eq.s32.totalorder %s13, 0
      %p106 = por %p104, %p105
      %p107 = scmp.ne.s32.totalorder %s96, %s99
      %p108 = scmp.eq.s32.totalorder %s18, 1
      %p109 = por %p107, %p108
      %p110 = scmp.ne.s32.totalorder %s99, %s100
      %p111 = scmp.eq.s32.totalorder %s18, 0
      %p112 = por %p110, %p111
      %p113 = scmp.ne.s32.totalorder %s99, %s100
      %p114 = scmp.eq.s32.totalorder %s19, 1
      %p115 = por %p113, %p114
      %p117 = scmp.ne.s32.totalorder %s100, %s116
      %p118 = scmp.eq.s32.totalorder %s19, 0
      %p119 = por %p117, %p118
      %p120 = scmp.le.s32.totalorder 1, %s13
      %p121 = scmp.lt.s32.totalorder %s13, 3
      %p122 = pnand %p120, %p121
      %p123 = pneg %p122
      // Predicated region
      $region9: #{tpu_custom_call.1} parent=5 // pred_check
        _
      $region10: #{tpu_custom_call.1} parent=5 // pred_check_branch
        %125 = sbr.rel (%p122) target = $region12
      $region11: #{tpu_custom_call.1} parent=5 // pred_region
        %s126 = ssub.s32 %s13, 1
        // Predicated region
        $region13: #{tpu_custom_call.1} parent=11 // pred_check
          %p127 = pneg %p34
        $region14: #{tpu_custom_call.1} parent=11 // pred_check_branch
          %129 = sbr.rel (%p127) target = $region16
        $region15: #{tpu_custom_call.1} parent=11 // pred_region
          _
        $region16: #{tpu_custom_call.1} parent=11 // pred_fallthru
          _
      $region12: #{tpu_custom_call.1} parent=5 // pred_fallthru
        _
      %p130 = scmp.lt.s32.totalorder %s13, 2
      // Predicated region
      $region17: #{tpu_custom_call.1} parent=5 // pred_check
        %p131 = pneg %p130
      $region18: #{tpu_custom_call.1} parent=5 // pred_check_branch
        %133 = sbr.rel (%p131) target = $region20
      $region19: #{tpu_custom_call.1} parent=5 // pred_region
        // Predicated region
        $region21: #{tpu_custom_call.1} parent=19 // pred_check
          %p134 = pneg %p54
        $region22: #{tpu_custom_call.1} parent=19 // pred_check_branch
          %136 = sbr.rel (%p134) target = $region24
        $region23: #{tpu_custom_call.1} parent=19 // pred_region
          %p137 = scmp.lt.s32.totalorder %s13, 1
          %s138 = scalar_select %p137, %s13, 1
          %s139 = smul.addr %s138, 8
          %s140 = scalar_lea.vmem %s1, %s139
        $region24: #{tpu_custom_call.1} parent=19 // pred_fallthru
          _
        // Predicated region
        $region25: #{tpu_custom_call.1} parent=19 // pred_check
          %p141 = pneg %p80
        $region26: #{tpu_custom_call.1} parent=19 // pred_check_branch
          %143 = sbr.rel (%p141) target = $region28
        $region27: #{tpu_custom_call.1} parent=19 // pred_region
          %p144 = scmp.lt.s32.totalorder %s13, 1
          %s145 = scalar_select %p144, %s13, 1
          %s146 = smul.addr %s145, 8
          %s147 = scalar_lea.vmem %s2, %s146
        $region28: #{tpu_custom_call.1} parent=19 // pred_fallthru
          _
      $region20: #{tpu_custom_call.1} parent=5 // pred_fallthru
        _
      %p148 = scmp.le.s32.totalorder 1, %s13
      %p149 = scmp.lt.s32.totalorder %s13, 3
      %p150 = pnand %p148, %p149
      %p151 = pneg %p150
      // Predicated region
      $region29: #{tpu_custom_call.1} parent=5 // pred_check
        _
      $region30: #{tpu_custom_call.1} parent=5 // pred_check_branch
        %153 = sbr.rel (%p150) target = $region32
      $region31: #{tpu_custom_call.1} parent=5 // pred_region
        %s154 = ssub.s32 %s13, 1
        %p155 = pneg %p34
        %p156 = pneg %p31
        %p157 = scmp.lt.s32.totalorder %s18, 1
        %s158 = scalar_select %p157, %s18, 1
        %s159 = smul.addr %s158, 8
        %s160 = scalar_lea.vmem %s1, %s159
        %p161 = pneg %p60
        %p162 = pneg %p57
        %p163 = scmp.lt.s32.totalorder %s18, 1
        %s164 = scalar_select %p163, %s18, 1
        %s165 = smul.addr %s164, 8
        %s166 = scalar_lea.vmem %s2, %s165
        %p167 = pneg %p86
        %p168 = pneg %p83
        %p169 = pneg %p112
        %p170 = pneg %p109
        %s171 = sand.u32 %s99, 1
        %s172 = scalar_lea.sflag [#allocation4], %s171
        %s173 = sand.u32 %s99, 1
        %s174 = smul.addr %s173, 8
        %s175 = scalar_lea.vmem [#allocation3], %s174
        %p176 = scmp.lt.s32.totalorder %s18, 1
        %s177 = scalar_select %p176, %s18, 1
        %s178 = smul.addr %s177, 8
        %s179 = scalar_lea.vmem %s1, %s178
        %p180 = scmp.lt.s32.totalorder %s18, 1
        %s181 = scalar_select %p180, %s18, 1
        %s182 = smul.addr %s181, 8
        %s183 = scalar_lea.vmem %s2, %s182
        %s184 = sld [smem:[#allocation2]]
        %v185 = vld [vmem:[%s179] sm:$0xff]
        %v186 = vld [vmem:[%s183] sm:$0xff]
        %v187 = vstv %s184
        %v188 = vmul.f32 %v186, %v187
        %190 = vset.pattern.permute.xlu0 0
        %191 = vperm.xlu0 %190, %v188
        %v192 = vpop.permute.xlu0 %191
        %v194 = vmul.f32 %v185, %v192
        %195 = vst [vmem:[%s175] sm:$0xff] %v194
        %s196 = sand.u32 %s99, 1
        %s197 = scalar_lea.sflag [#allocation4], %s196
        %s198 = sand.u32 %s99, 1
        %s199 = smul.addr %s198, 8
        %s200 = scalar_lea.vmem [#allocation3], %s199
        // Predicated region
        $region33: #{tpu_custom_call.1} parent=31 // pred_check
          %p201 = pneg %p109
        $region34: #{tpu_custom_call.1} parent=31 // pred_check_branch
          %203 = sbr.rel (%p201) target = $region36
        $region35: #{tpu_custom_call.1} parent=31 // pred_region
          %s205 = ssub.s32 128, 128
          %206 = vsyncadd %s197, %s205
          %s207 = smul.addr %s18, 128
          %s208 = scalar_lea.hbm %s3, %s207
          %s210 = sshll.u32 %s200, 4
          %s211 = int_to_ptr.vmem [resolvable:$true] %s210
          %213 = dma.vmem_to_hbm [thread:$0]  %s211, 128, %s208, %s197
        $region36: #{tpu_custom_call.1} parent=31 // pred_fallthru
          _
      $region32: #{tpu_custom_call.1} parent=5 // pred_fallthru
        _
      %p214 = scmp.le.s32.totalorder 2, %s13
      // Predicated region
      $region37: #{tpu_custom_call.1} parent=5 // pred_check
        %p215 = pneg %p214
      $region38: #{tpu_custom_call.1} parent=5 // pred_check_branch
        %217 = sbr.rel (%p215) target = $region40
      $region39: #{tpu_custom_call.1} parent=5 // pred_region
        %s218 = ssub.s32 %s13, 2
        // Predicated region
        $region41: #{tpu_custom_call.1} parent=39 // pred_check
          %p219 = pneg %p115
        $region42: #{tpu_custom_call.1} parent=39 // pred_check_branch
          %221 = sbr.rel (%p219) target = $region44
        $region43: #{tpu_custom_call.1} parent=39 // pred_region
          %s222 = sand.u32 %s100, 1
          %s223 = scalar_lea.sflag [#allocation4], %s222
          %s224 = sand.u32 %s100, 1
          %s225 = smul.addr %s224, 8
          %s226 = scalar_lea.vmem [#allocation3], %s225
          %227 = dma.done %s223, 128
        $region44: #{tpu_custom_call.1} parent=39 // pred_fallthru
          _
      $region40: #{tpu_custom_call.1} parent=5 // pred_fallthru
        _
    $region6: #{tpu_custom_call.1} parent=1 // loop_footer
      %s17 = sadd.s32 1, %s13
    $region7: #{tpu_custom_call.1} parent=1 // loop_footer_branch
      %12 = sbr.rel target = $region3
    $region8: #{tpu_custom_call.1} parent=1 // loop_exit
      _
    %228 = vsyncpa [#allocation4], 1
    %s229 = scalar_lea.sflag [#allocation4], 1
    %230 = vsyncpa %s229, 1

</llo_original>
